<compile_context>
chip_gen: v7x
topology: tpu7x:2x2x1
jax: 0.10.0
libtpu: 0.0.40
codegen_flags: <defaults>
</compile_context>

<pallas_src>
import functools

import jax
import jax.numpy as jnp
from jax import lax
from jax.experimental import pallas as pl
from jax.experimental.pallas import tpu as pltpu

EPS = 1e-5


def _layernorm_body(z, g_ref, b_ref, o_ref, inv_h):
    """z: (TILE_R, H) float32 residual sum. Writes LayerNorm(z) to o_ref."""
    mean = jnp.sum(z, axis=-1, keepdims=True) * jnp.float32(inv_h)
    centered = z - mean
    var = jnp.sum(centered * centered, axis=-1, keepdims=True) * jnp.float32(inv_h)
    norm = centered * lax.rsqrt(var + jnp.float32(EPS))
    o_ref[...] = (norm * g_ref[...] + b_ref[...]).astype(o_ref.dtype)


def _addnorm_kernel(x_ref, y_ref, g_ref, b_ref, o_ref, *, inv_h):
    """Eval mode: LayerNorm(Y + X) for one row tile."""
    z = (x_ref[...] + y_ref[...]).astype(jnp.float32)
    _layernorm_body(z, g_ref, b_ref, o_ref, inv_h)


def _addnorm_dropout_kernel(x_ref, y_ref, m_ref, g_ref, b_ref, o_ref, *, inv_h):
    """Training mode: LayerNorm(Y * mask + X); mask is pre-scaled by 1/(1-p)."""
    z = (x_ref[...] + y_ref[...] * m_ref[...]).astype(jnp.float32)
    _layernorm_body(z, g_ref, b_ref, o_ref, inv_h)


def _round_up(n, m):
    return ((n + m - 1) // m) * m


def add_norm(x, y, gamma, beta, *, dropout_p=0.1, training=False, rng_key=None,
             tile_rows=None, vmem_budget_bytes=24 * 1024 * 1024):
    """Pallas AddNorm: LayerNorm(dropout(Y) + X) over the last dim.

    x, y: (B, S, H); gamma, beta: (H,)
    """
    B, S, H = x.shape
    rows = B * S
    itemsize = jnp.dtype(x.dtype).itemsize

    use_dropout = bool(training) and float(dropout_p) > 0.0

    x2 = x.reshape(rows, H)
    y2 = y.reshape(rows, H)
    # Pre-cast affine params once (kernel never re-casts per grid step).
    g2 = gamma.astype(jnp.float32).reshape(1, H)
    b2 = beta.astype(jnp.float32).reshape(1, H)

    inputs = [x2, y2]
    n_io = 3  # X, Y, out (each streamed through VMEM, double-buffered)
    if use_dropout:
        if rng_key is None:
            rng_key = jax.random.PRNGKey(0)
        keep = jax.random.bernoulli(rng_key, 1.0 - float(dropout_p), (rows, H))
        mask2 = keep.astype(x.dtype) * jnp.asarray(
            1.0 / (1.0 - float(dropout_p)), dtype=x.dtype)
        inputs.append(mask2)
        n_io += 1

    # --- Tile sizing: memory-bound, so pick the largest row tile that keeps
    # the double-buffered streamed tiles within the VMEM budget (budget is
    # conservative so it also fits v7x's 64 MiB physical VMEM with headroom
    # for the f32 compute temporaries).
    if tile_rows is None:
        bytes_per_row_io = n_io * H * itemsize
        tr = vmem_budget_bytes // (2 * bytes_per_row_io)  # 2x for double buffering
        tr = max(8, min(2048, (tr // 8) * 8))              # sublane-aligned
        tile_rows = min(tr, _round_up(rows, 8))            # don't over-pad tiny inputs
    tile_rows = max(8, (tile_rows // 8) * 8)

    # Handle arbitrary row counts by padding to a tile multiple (sliced off below).
    padded_rows = pl.cdiv(rows, tile_rows) * tile_rows
    if padded_rows != rows:
        pad = padded_rows - rows
        inputs = [jnp.pad(a, ((0, pad), (0, 0))) for a in inputs]

    row_spec = pl.BlockSpec((tile_rows, H), lambda i: (i, 0))
    vec_spec = pl.BlockSpec((1, H), lambda i: (0, 0))

    if use_dropout:
        kernel = functools.partial(_addnorm_dropout_kernel, inv_h=1.0 / H)
        in_specs = [row_spec, row_spec, row_spec, vec_spec, vec_spec]
    else:
        kernel = functools.partial(_addnorm_kernel, inv_h=1.0 / H)
        in_specs = [row_spec, row_spec, vec_spec, vec_spec]

    out2 = pl.pallas_call(
        kernel,
        out_shape=jax.ShapeDtypeStruct((padded_rows, H), x.dtype),
        grid_spec=pltpu.PrefetchScalarGridSpec(
            num_scalar_prefetch=0,
            grid=(padded_rows // tile_rows,),
            in_specs=in_specs,
            out_specs=row_spec,
        ),
        compiler_params=pltpu.CompilerParams(
            # Row tiles are fully independent -> let megacore split the grid.
            dimension_semantics=("parallel",),
            # Raised scoped VMEM so the large double-buffered tiles fit, while
            # staying below v7x's 64 MiB physical VMEM.
            vmem_limit_bytes=48 * 1024 * 1024,
        ),
    )(*inputs, g2, b2)

    if padded_rows != rows:
        out2 = out2[:rows]
    return out2.reshape(B, S, H)


def add_norm_ref(x, y, gamma, beta):
    """Pure-JAX reference (eval-mode dropout = identity)."""
    z = (y + x).astype(jnp.float32)
    mean = jnp.mean(z, axis=-1, keepdims=True)
    var = jnp.mean((z - mean) ** 2, axis=-1, keepdims=True)
    norm = (z - mean) / jnp.sqrt(var + EPS)
    return (norm * gamma + beta).astype(x.dtype)


if __name__ == "__main__":
    # Shapes implied by the transformer AddNorm usage: (batch, seq, hidden).
    B, S, H = 2, 8, 32
    key = jax.random.PRNGKey(0)
    kx, ky, kd = jax.random.split(key, 3)
    x = jax.random.normal(kx, (B, S, H), dtype=jnp.float32)
    y = jax.random.normal(ky, (B, S, H), dtype=jnp.float32)

    # nn.LayerNorm default init: weight = ones, bias = zeros (deterministic).
    gamma = jnp.ones((H,), dtype=jnp.float32)
    beta = jnp.zeros((H,), dtype=jnp.float32)

    # Eval-mode forward (dropout is identity), matches PyTorch module.eval().
    out = add_norm(x, y, gamma, beta, dropout_p=0.1, training=False)
    out = jax.block_until_ready(out)

    ref = add_norm_ref(x, y, gamma, beta)
    assert out.shape == (B, S, H)
    assert jnp.allclose(out, ref, atol=1e-4, rtol=1e-4), "mismatch vs reference"

    # Training-mode path (fused host-generated dropout mask): output must be
    # finite and row-normalized; exact mask differs from torch.nn.Dropout's RNG.
    out_train = jax.block_until_ready(
        add_norm(x, y, gamma, beta, dropout_p=0.1, training=True, rng_key=kd))
    assert out_train.shape == (B, S, H)
    assert jnp.all(jnp.isfinite(out_train))

    print("KERNEL_OK")
</pallas_src>

<mosaic_0001>
module attributes {stable_mosaic.version = 11 : i64} {
  func.func @_addnorm_kernel(%arg0: i32, %arg1: memref<16x32xf32, #tpu.memory_space<vmem>>, %arg2: memref<16x32xf32, #tpu.memory_space<vmem>>, %arg3: memref<1x32xf32, #tpu.memory_space<vmem>>, %arg4: memref<1x32xf32, #tpu.memory_space<vmem>>, %arg5: memref<16x32xf32, #tpu.memory_space<vmem>>) attributes {dimension_semantics = [#tpu.dimension_semantics<parallel>], iteration_bounds = array<i64: 1>, scalar_prefetch = 0 : i64, scratch_operands = 0 : i64, tpu.core_type = #tpu.core_type<tc>, window_params = [{transform_indices = @transform_0, window_bounds = array<i64: 16, 32>}, {transform_indices = @transform_1, window_bounds = array<i64: 16, 32>}, {pipeline_mode = #tpu.pipeline_mode<synchronous>, transform_indices = @transform_2, window_bounds = array<i64: 1, 32>}, {pipeline_mode = #tpu.pipeline_mode<synchronous>, transform_indices = @transform_3, window_bounds = array<i64: 1, 32>}, {transform_indices = @transform_4, window_bounds = array<i64: 16, 32>}]} {
    %c0 = arith.constant 0 : index
    %c0_0 = arith.constant 0 : index
    %0 = vector.load %arg1[%c0, %c0_0] : memref<16x32xf32, #tpu.memory_space<vmem>>, vector<16x32xf32>
    %c0_1 = arith.constant 0 : index
    %c0_2 = arith.constant 0 : index
    %1 = vector.load %arg2[%c0_1, %c0_2] : memref<16x32xf32, #tpu.memory_space<vmem>>, vector<16x32xf32>
    %2 = arith.addf %0, %1 : vector<16x32xf32>
    %cst = arith.constant dense<0.000000e+00> : vector<16xf32>
    %3 = vector.multi_reduction <add>, %2, %cst [1] : vector<16x32xf32> to vector<16xf32>
    %4 = vector.shape_cast %3 : vector<16xf32> to vector<16x1xf32>
    %cst_3 = arith.constant 3.125000e-02 : f32
    %5 = vector.broadcast %cst_3 : f32 to vector<16x1xf32>
    %6 = arith.mulf %4, %5 : vector<16x1xf32>
    %7 = vector.broadcast %6 : vector<16x1xf32> to vector<16x32xf32>
    %8 = arith.subf %2, %7 : vector<16x32xf32>
    %9 = arith.mulf %8, %8 : vector<16x32xf32>
    %cst_4 = arith.constant dense<0.000000e+00> : vector<16xf32>
    %10 = vector.multi_reduction <add>, %9, %cst_4 [1] : vector<16x32xf32> to vector<16xf32>
    %11 = vector.shape_cast %10 : vector<16xf32> to vector<16x1xf32>
    %cst_5 = arith.constant 3.125000e-02 : f32
    %12 = vector.broadcast %cst_5 : f32 to vector<16x1xf32>
    %13 = arith.mulf %11, %12 : vector<16x1xf32>
    %cst_6 = arith.constant 9.99999974E-6 : f32
    %14 = vector.broadcast %cst_6 : f32 to vector<16x1xf32>
    %15 = arith.addf %13, %14 : vector<16x1xf32>
    %16 = math.rsqrt %15 : vector<16x1xf32>
    %17 = vector.broadcast %16 : vector<16x1xf32> to vector<16x32xf32>
    %18 = arith.mulf %8, %17 : vector<16x32xf32>
    %c0_7 = arith.constant 0 : index
    %c0_8 = arith.constant 0 : index
    %19 = vector.load %arg3[%c0_7, %c0_8] : memref<1x32xf32, #tpu.memory_space<vmem>>, vector<1x32xf32>
    %20 = vector.broadcast %19 : vector<1x32xf32> to vector<16x32xf32>
    %21 = arith.mulf %18, %20 : vector<16x32xf32>
    %c0_9 = arith.constant 0 : index
    %c0_10 = arith.constant 0 : index
    %22 = vector.load %arg4[%c0_9, %c0_10] : memref<1x32xf32, #tpu.memory_space<vmem>>, vector<1x32xf32>
    %23 = vector.broadcast %22 : vector<1x32xf32> to vector<16x32xf32>
    %24 = arith.addf %21, %23 : vector<16x32xf32>
    %c0_11 = arith.constant 0 : index
    %c0_12 = arith.constant 0 : index
    %25 = vector.load %arg5[%c0_11, %c0_12] : memref<16x32xf32, #tpu.memory_space<vmem>>, vector<16x32xf32>
    tpu.vector_store %arg5[%c0_11, %c0_12], %24 {strides = array<i32>} : memref<16x32xf32, #tpu.memory_space<vmem>>, vector<16x32xf32>,
    return
  }
  func.func @transform_0(%arg0: i32) -> (i32, i32) {
    %c0_i32 = arith.constant 0 : i32
    %c0_i32_0 = arith.constant 0 : i32
    return %arg0, %c0_i32 : i32, i32
  }
  func.func @transform_1(%arg0: i32) -> (i32, i32) {
    %c0_i32 = arith.constant 0 : i32
    %c0_i32_0 = arith.constant 0 : i32
    return %arg0, %c0_i32 : i32, i32
  }
  func.func @transform_2(%arg0: i32) -> (i32, i32) {
    %c0_i32 = arith.constant 0 : i32
    %c0_i32_0 = arith.constant 0 : i32
    %c0_i32_1 = arith.constant 0 : i32
    return %c0_i32, %c0_i32_0 : i32, i32
  }
  func.func @transform_3(%arg0: i32) -> (i32, i32) {
    %c0_i32 = arith.constant 0 : i32
    %c0_i32_0 = arith.constant 0 : i32
    %c0_i32_1 = arith.constant 0 : i32
    return %c0_i32, %c0_i32_0 : i32, i32
  }
  func.func @transform_4(%arg0: i32) -> (i32, i32) {
    %c0_i32 = arith.constant 0 : i32
    %c0_i32_0 = arith.constant 0 : i32
    return %arg0, %c0_i32 : i32, i32
  }
}

</mosaic_0001>

<llo_original>
// kernel: tpu_custom_call.1
$region0: #{tpu_custom_call.1}
  #allocation0 [shape = 'u32[]', space=smem, size = 0x4, offset = 0x4, fixed_abs, tag = 'smem constant byte address 0x4 - core index']
  #allocation1 [shape = 'u32[144,128]{1,0:T(1,128)}', space=vmem, size = 0x12000, scoped, tag = 'internal scratch']
  %s0 = inlined_call_operand.hbm [shape: f32[16,32], index: 0, kind: input, shape index: {}]
  %s1 = inlined_call_operand.hbm [shape: f32[16,32], index: 1, kind: input, shape index: {}]
  %s2 = inlined_call_operand.vmem [shape: f32[1,32], index: 2, kind: input, shape index: {}]
  %s3 = inlined_call_operand.vmem [shape: f32[1,32], index: 3, kind: input, shape index: {}]
  %s4 = inlined_call_operand.hbm [shape: f32[16,32], index: 4, kind: output, shape index: {}]
  %s5 = sld [smem:[#allocation0]]
  $region34: #{tpu_custom_call.1} parent=0
    _
  %s7 = ssub.s32 1, %s5
  %s8 = scalar_select 0, %s7, %s5
  $region1: #{tpu_custom_call.1} parent=0
    #allocation2 [shape = 'u8[8192]{0}', space=vmem, size = 0x2000, scoped, tag = 'input window, operand 0, single buffered']
    #allocation3 [shape = 's32[1]{0}', space=sflag, size = 0x4, scoped, tag = 'scoped memory for tpu_custom_call.1']
    #allocation4 [shape = 's32[1]{0}', space=sflag, size = 0x4, scoped, tag = 'scoped memory for tpu_custom_call.1']
    #allocation5 [shape = 'u8[8192]{0}', space=vmem, size = 0x2000, scoped, tag = 'input window, operand 1, single buffered']
    #allocation6 [shape = 's32[1]{0}', space=sflag, size = 0x4, scoped, tag = 'scoped memory for tpu_custom_call.1']
    #allocation7 [shape = 'u8[8192]{0}', space=vmem, size = 0x2000, scoped, tag = 'output window, operand 0, single buffered']
    %9 = vsyncpa [#allocation3], 0
    %10 = vsyncpa [#allocation6], 0
    %11 = vsyncpa [#allocation4], 0
    // Predicated region
    $region2: #{tpu_custom_call.1} parent=1 // pred_check
      _
    $region3: #{tpu_custom_call.1} parent=1 // pred_check_branch
      %13 = sbr.rel (0) target = $region5
    $region4: #{tpu_custom_call.1} parent=1 // pred_region
      %s15 = ssub.s32 256, 256
      %16 = vsyncadd [#allocation3], %s15
      %s17 = sshll.u32 [#allocation2], 4
      %s18 = int_to_ptr.vmem [resolvable:$true] %s17
      %23 = dma.hbm_to_vmem [thread:$0]  %s0, 256, %s18, [#allocation3], 128, 128, 8
    $region5: #{tpu_custom_call.1} parent=1 // pred_fallthru
      _
    // Predicated region
    $region6: #{tpu_custom_call.1} parent=1 // pred_check
      _
    $region7: #{tpu_custom_call.1} parent=1 // pred_check_branch
      %25 = sbr.rel (0) target = $region9
    $region8: #{tpu_custom_call.1} parent=1 // pred_region
      %s27 = ssub.s32 256, 256
      %28 = vsyncadd [#allocation6], %s27
      %s29 = sshll.u32 [#allocation5], 4
      %s30 = int_to_ptr.vmem [resolvable:$true] %s29
      %35 = dma.hbm_to_vmem [thread:$0]  %s1, 256, %s30, [#allocation6], 128, 128, 8
    $region9: #{tpu_custom_call.1} parent=1 // pred_fallthru
      _
    // Predicated region
    $region10: #{tpu_custom_call.1} parent=1 // pred_check
      _
    $region11: #{tpu_custom_call.1} parent=1 // pred_check_branch
      %37 = sbr.rel (0) target = $region13
    $region12: #{tpu_custom_call.1} parent=1 // pred_region
      _
    $region13: #{tpu_custom_call.1} parent=1 // pred_fallthru
      _
    // Predicated region
    $region14: #{tpu_custom_call.1} parent=1 // pred_check
      _
    $region15: #{tpu_custom_call.1} parent=1 // pred_check_branch
      %39 = sbr.rel (0) target = $region17
    $region16: #{tpu_custom_call.1} parent=1 // pred_region
      _
    $region17: #{tpu_custom_call.1} parent=1 // pred_fallthru
      _
    // Predicated region
    $region18: #{tpu_custom_call.1} parent=1 // pred_check
      _
    $region19: #{tpu_custom_call.1} parent=1 // pred_check_branch
      %41 = sbr.rel (0) target = $region21
    $region20: #{tpu_custom_call.1} parent=1 // pred_region
      %42 = dma.done [#allocation3], 256
    $region21: #{tpu_custom_call.1} parent=1 // pred_fallthru
      _
    // Predicated region
    $region22: #{tpu_custom_call.1} parent=1 // pred_check
      _
    $region23: #{tpu_custom_call.1} parent=1 // pred_check_branch
      %44 = sbr.rel (0) target = $region25
    $region24: #{tpu_custom_call.1} parent=1 // pred_region
      %45 = dma.done [#allocation6], 256
    $region25: #{tpu_custom_call.1} parent=1 // pred_fallthru
      _
    %v46 = vld [vmem:[#allocation2] sm:$0xff]
    %v47 = vld [vmem:[#allocation2 + $0x8] sm:$0xff]
    %v48 = vld [vmem:[#allocation5] sm:$0xff]
    %v49 = vld [vmem:[#allocation5 + $0x8] sm:$0xff]
    %v50 = vadd.f32 %v46, %v48
    %v51 = vadd.f32 %v47, %v49
    %vm52 = vcmask 261120
    %v53 = vsel %vm52, %v50, 0.0
    %54 = vadd.xlane.f32.xlu0 %v53
    %v55 = vpop.xlane.xlu0 %54
    %v56 = vsel %vm52, %v51, 0.0
    %57 = vadd.xlane.f32.xlu0 %v56
    %v58 = vpop.xlane.xlu0 %57
    %v59 = vmul.f32 %v55, 0.03125
    %v60 = vmul.f32 %v58, 0.03125
    %v61 = vsub.f32 %v50, %v59
    %v62 = vsub.f32 %v51, %v60
    %v63 = vmul.f32 %v61, %v61
    %v64 = vmul.f32 %v62, %v62
    %v65 = vsel %vm52, %v63, 0.0
    %66 = vadd.xlane.f32.xlu0 %v65
    %v67 = vpop.xlane.xlu0 %66
    %v68 = vsel %vm52, %v64, 0.0
    %69 = vadd.xlane.f32.xlu0 %v68
    %v70 = vpop.xlane.xlu0 %69
    %v71 = vmul.f32 %v67, 0.03125
    %v72 = vmul.f32 %v70, 0.03125
    %v73 = vadd.f32 %v71, 1e-05
    %v74 = vadd.f32 %v72, 1e-05
    %v75 = vrsqrt.pop %v73
    %v76 = vrsqrt.pop %v74
    %v77 = vmul.f32 %v61, %v75
    %v78 = vmul.f32 %v62, %v76
    %v79 = vld [vmem:[%s2] sm:$0x1]
    %v81 = vlaneseq
    %v82 = vshrl.u32 %v81, 7
    %v83 = vsub.s32 0, %v82
    %v84 = vrot.slane %v79, %v83
    %v86 = vmul.f32 %v77, %v84
    %v87 = vmul.f32 %v78, %v84
    %v88 = vld [vmem:[%s3] sm:$0x1]
    %v90 = vlaneseq
    %v91 = vshrl.u32 %v90, 7
    %v92 = vsub.s32 0, %v91
    %v93 = vrot.slane %v88, %v92
    %v95 = vadd.f32 %v86, %v93
    %v96 = vadd.f32 %v87, %v93
    %97 = vst.msk [vmem:[#allocation7] sm:$0xff] %vm52, %v95
    %98 = vst.msk [vmem:[#allocation7 + $0x8] sm:$0xff] %vm52, %v96
    // Predicated region
    $region26: #{tpu_custom_call.1} parent=1 // pred_check
      _
    $region27: #{tpu_custom_call.1} parent=1 // pred_check_branch
      %100 = sbr.rel (0) target = $region29
    $region28: #{tpu_custom_call.1} parent=1 // pred_region
      %s102 = ssub.s32 256, 256
      %103 = vsyncadd [#allocation4], %s102
      %s104 = sshll.u32 [#allocation7], 4
      %s105 = int_to_ptr.vmem [resolvable:$true] %s104
      %110 = dma.vmem_to_hbm [thread:$0]  %s105, 256, %s4, [#allocation4], 128, 128, 8
    $region29: #{tpu_custom_call.1} parent=1 // pred_fallthru
      _
    // Predicated region
    $region30: #{tpu_custom_call.1} parent=1 // pred_check
      _
    $region31: #{tpu_custom_call.1} parent=1 // pred_check_branch
      %112 = sbr.rel (0) target = $region33
    $region32: #{tpu_custom_call.1} parent=1 // pred_region
      %113 = dma.done [#allocation4], 256
    $region33: #{tpu_custom_call.1} parent=1 // pred_fallthru
      _
    %114 = vsyncpa [#allocation3], 1
    %115 = vsyncpa [#allocation6], 1
    %116 = vsyncpa [#allocation4], 1

</llo_original>
